<compile_context>
chip_gen: v6e
topology: v6e:2x2x1
jax: 0.10.0
libtpu: 0.0.40
codegen_flags: <defaults>
</compile_context>

<pallas_src>
import functools

import jax
import jax.numpy as jnp
import numpy as np
from jax.experimental import pallas as pl
from jax.experimental.pallas import tpu as pltpu

SCORE_THRESH = 0.75      # `if scores[i] > 0.75` in the module
MASK_NUMBER = 0          # global `mask_number = 0`
SAM_IMG_SIZE = 1024      # SAM ResizeLongestSide target long side
MASK_THRESHOLD = 0.0     # SAM binarization threshold for predict_torch masks

K_PROMPT = 8             # 4 box coords + 1 bias column + 3 zero pad (f32 sublane multiple)
N_SUBLANE_I8 = 32        # int8 output sublane tile -> unmasked stores


# ---------------------------------------------------------------------------
# Fused kernel (per HW tile):
#   w_eff   = w_dec @ emb_tile            [8, THW]   (big embedding contracted once)
#   logits  = prompts @ w_eff             [Npad, THW]
#   masks   = logits > 0                  [Npad, THW] int8, lane-dense
# Scale, mask-token bias and the score>0.75 keep mask are all pre-folded into
# `prompts` / `w_dec` on the host (dropped / padded rows are all-zero).
# ---------------------------------------------------------------------------
def segmenter_kernel(prompts_ref, wdec_ref, emb_ref, masks_ref):
    w_eff = jnp.dot(wdec_ref[...], emb_ref[...],
                    preferred_element_type=jnp.float32)          # [8, THW]
    logits = jnp.dot(prompts_ref[...], w_eff,
                     preferred_element_type=jnp.float32)         # [Npad, THW]
    masks_ref[...] = (logits > MASK_THRESHOLD).astype(jnp.int8)


def _pick_hw_tile(hw):
    """Largest lane tile <= 2048 that is a multiple of 128 and divides HW."""
    cap = min(hw, 2048)
    start = cap - (cap % 128)
    for t in range(start, 0, -128):
        if hw % t == 0:
            return t
    return hw  # HW < 128: single full block


# ---------------------------------------------------------------------------
# Wrapper: InstanceSegmenter.forward
# ---------------------------------------------------------------------------
@functools.partial(jax.jit, static_argnames=("img_hw", "emb_hw"))
def instance_segmenter_forward(scores, boxes, classes,
                               w_box, mask_token_bias, image_embedding,
                               *, img_hw, emb_hw):
    N = scores.shape[0]
    C = w_box.shape[1]
    H, W = emb_hw
    HW = H * W
    Npad = ((N + N_SUBLANE_I8 - 1) // N_SUBLANE_I8) * N_SUBLANE_I8

    # SAM ResizeLongestSide.apply_boxes scale factors (static image size -> constants).
    old_h, old_w = img_hw
    s = SAM_IMG_SIZE / max(old_h, old_w)
    new_h, new_w = int(old_h * s + 0.5), int(old_w * s + 0.5)
    sx, sy = new_w / old_w, new_h / old_h
    scale = np.array([sx, sy, sx, sy], dtype=np.float32)          # compile-time const

    scores_f = scores.astype(jnp.float32)
    boxes_f = boxes.astype(jnp.float32)
    keep_b = scores_f > SCORE_THRESH                              # [N] bool
    keep_f = keep_b.astype(jnp.float32)

    # Prompt block [Npad, 8]: cols 0-3 raw boxes, col 4 = 1 (bias column), cols 5-7 = 0.
    # Dropped and padded rows are all-zero -> logits 0 -> mask false (keep folded in).
    prompts = jnp.concatenate(
        [boxes_f,
         jnp.ones((N, 1), jnp.float32),
         jnp.zeros((N, K_PROMPT - 5), jnp.float32)], axis=1) * keep_f[:, None]
    prompts = jnp.pad(prompts, ((0, Npad - N), (0, 0)))           # [Npad, 8]

    # Combined decoder weights [8, C]: scale folded into the 4 box-projection rows,
    # then the mask-token bias row (only channel `mask_number` is decoded), then zeros.
    w_dec = jnp.concatenate(
        [w_box.astype(jnp.float32) * scale[:, None],
         mask_token_bias[MASK_NUMBER:MASK_NUMBER + 1].astype(jnp.float32),
         jnp.zeros((K_PROMPT - 5, C), jnp.float32)], axis=0)      # [8, C]

    # No dtype round-trip on the dominant operand: pass the f32 embedding straight in.
    emb_flat = image_embedding.astype(jnp.float32).reshape(C, HW)  # [C, HW] lane-dense

    thw = _pick_hw_tile(HW)
    grid = (HW // thw,)

    cost = pl.CostEstimate(
        flops=2 * K_PROMPT * C * HW + 2 * Npad * K_PROMPT * HW,
        transcendentals=0,
        bytes_accessed=4 * C * HW + Npad * HW
        + 4 * (Npad * K_PROMPT + K_PROMPT * C))

    masks_i8 = pl.pallas_call(
        segmenter_kernel,
        out_shape=jax.ShapeDtypeStruct((Npad, HW), jnp.int8),
        grid=grid,
        in_specs=[pl.BlockSpec((Npad, K_PROMPT), lambda i: (0, 0)),   # resident
                  pl.BlockSpec((K_PROMPT, C), lambda i: (0, 0)),      # resident
                  pl.BlockSpec((C, thw), lambda i: (0, i))],          # pipelined
        out_specs=pl.BlockSpec((Npad, thw), lambda i: (0, i)),
        compiler_params=pltpu.CompilerParams(
            dimension_semantics=("parallel",)),
        cost_estimate=cost,
    )(prompts, w_dec, emb_flat)

    pred_masks = masks_i8[:N].reshape(N, H, W).astype(jnp.bool_)   # glue slice/reshape

    # Trivial per-detection bookkeeping (~tens of FLOPs): plain jnp, no kernel launch.
    scale_arr = jnp.asarray(scale)[None, :]                        # [1, 4]
    tboxes = boxes_f * scale_arr * keep_f[:, None]                 # SAM-space prompt boxes
    pred_boxes = boxes_f * keep_f[:, None]                         # original boxes
    pred_scores = scores_f * keep_f
    pred_classes = jnp.where(keep_b, classes, -jnp.ones_like(classes))  # -1 = dropped

    # NOTE: the PyTorch module compacts the kept detections into a shorter list;
    # TPU kernels need static shapes, so we return fixed-N outputs + `keep` mask.
    return {
        "pred_masks": pred_masks,          # [N, H, W] bool   (mask channel `mask_number`)
        "pred_boxes": pred_boxes,          # [N, 4]    f32
        "scores": pred_scores,             # [N]       f32
        "pred_classes": pred_classes,      # [N]       i32 (-1 for dropped)
        "keep": keep_b,                    # [N]       bool
        "transformed_boxes": tboxes,       # [N, 4]    f32 (SAM-space prompt boxes)
    }


# ---------------------------------------------------------------------------
# Pure-jnp reference (non-reassociated f32 math) for correctness checking.
# ---------------------------------------------------------------------------
def reference_masks(scores, boxes, w_box, mask_token_bias, image_embedding,
                    img_hw, emb_hw):
    N = scores.shape[0]
    C = w_box.shape[1]
    H, W = emb_hw
    old_h, old_w = img_hw
    s = SAM_IMG_SIZE / max(old_h, old_w)
    new_h, new_w = int(old_h * s + 0.5), int(old_w * s + 0.5)
    sx, sy = new_w / old_w, new_h / old_h
    scale = jnp.array([[sx, sy, sx, sy]], jnp.float32)

    keep = scores.astype(jnp.float32) > SCORE_THRESH
    tboxes = boxes.astype(jnp.float32) * scale                    # [N, 4]
    emb = image_embedding.reshape(C, H * W).astype(jnp.float32)
    box_emb = tboxes @ w_box.astype(jnp.float32)                  # [N, C]
    logits = box_emb @ emb + mask_token_bias[MASK_NUMBER].astype(jnp.float32) @ emb
    masks = (logits > MASK_THRESHOLD) & keep[:, None]
    return masks.reshape(N, H, W)


if __name__ == "__main__":
    key = jax.random.PRNGKey(0)
    (k_sc, k_x1, k_y1, k_wd, k_hg, k_cl, k_wb, k_tk, k_emb) = jax.random.split(key, 9)

    # Small synthetic shapes.
    N = 8            # detections from DETR predictor (fixed, padded)
    M = 3            # SAM multimask_output channels (only `mask_number` is consumed)
    C = 32           # SAM embedding channels
    H = W = 16       # SAM image-embedding spatial size
    IMG_H, IMG_W = 64, 48   # "image" size seen by the detector / SAM transform

    # Synthetic detector outputs (stand-in for DefaultPredictor results).
    scores = jax.random.uniform(k_sc, (N,), jnp.float32, 0.4, 1.0)
    x1 = jax.random.uniform(k_x1, (N, 1), jnp.float32, 0.0, IMG_W * 0.5)
    y1 = jax.random.uniform(k_y1, (N, 1), jnp.float32, 0.0, IMG_H * 0.5)
    wdt = jax.random.uniform(k_wd, (N, 1), jnp.float32, 4.0, IMG_W * 0.5)
    hgt = jax.random.uniform(k_hg, (N, 1), jnp.float32, 4.0, IMG_H * 0.5)
    boxes = jnp.concatenate([x1, y1, x1 + wdt, y1 + hgt], axis=1)   # [N, 4] xyxy
    classes = jax.random.randint(k_cl, (N,), 0, 80, jnp.int32)

    # Synthetic SAM parameters (stand-in for prompt encoder / mask decoder / image encoder).
    w_box = jax.random.normal(k_wb, (4, C), jnp.float32) * 0.05
    mask_token_bias = jax.random.normal(k_tk, (M, C), jnp.float32)
    image_embedding = jax.random.normal(k_emb, (C, H, W), jnp.float32)

    out = instance_segmenter_forward(
        scores, boxes, classes, w_box, mask_token_bias, image_embedding,
        img_hw=(IMG_H, IMG_W), emb_hw=(H, W))
    jax.block_until_ready(out)

    assert out["pred_masks"].shape == (N, H, W)
    assert out["pred_boxes"].shape == (N, 4)
    assert out["scores"].shape == (N,)
    assert out["pred_classes"].shape == (N,)
    assert out["transformed_boxes"].shape == (N, 4)

    # Dropped detections must have all-false masks.
    keep_np = np.asarray(out["keep"])
    masks_np = np.asarray(out["pred_masks"])
    assert not masks_np[~keep_np].any()

    # Reference comparison (ref uses non-reassociated f32 math; the kernel uses f32
    # operands with a reassociated contraction order, so allow a vanishing fraction
    # of exact-boundary pixel flips).
    ref = np.asarray(reference_masks(scores, boxes, w_box, mask_token_bias,
                                     image_embedding, (IMG_H, IMG_W), (H, W)))
    mismatch = np.mean(masks_np != ref)
    assert mismatch <= 0.01, f"mask mismatch fraction {mismatch:.4f} too large"

    print("KERNEL_OK")
</pallas_src>

<mosaic_0001>
module attributes {stable_mosaic.version = 11 : i64} {
  func.func @segmenter_kernel(%arg0: i32, %arg1: memref<32x8xf32, #tpu.memory_space<vmem>>, %arg2: memref<8x32xf32, #tpu.memory_space<vmem>>, %arg3: memref<32x256xf32, #tpu.memory_space<vmem>>, %arg4: memref<32x256xi8, #tpu.memory_space<vmem>>) attributes {dimension_semantics = [#tpu.dimension_semantics<parallel>], iteration_bounds = array<i64: 1>, scalar_prefetch = 0 : i64, scratch_operands = 0 : i64, tpu.core_type = #tpu.core_type<tc>, window_params = [{pipeline_mode = #tpu.pipeline_mode<synchronous>, transform_indices = @transform_0, window_bounds = array<i64: 32, 8>}, {pipeline_mode = #tpu.pipeline_mode<synchronous>, transform_indices = @transform_1, window_bounds = array<i64: 8, 32>}, {transform_indices = @transform_2, window_bounds = array<i64: 32, 256>}, {transform_indices = @transform_3, window_bounds = array<i64: 32, 256>}]} {
    %c0 = arith.constant 0 : index
    %c0_0 = arith.constant 0 : index
    %0 = vector.load %arg2[%c0, %c0_0] : memref<8x32xf32, #tpu.memory_space<vmem>>, vector<8x32xf32>
    %c0_1 = arith.constant 0 : index
    %c0_2 = arith.constant 0 : index
    %1 = vector.load %arg3[%c0_1, %c0_2] : memref<32x256xf32, #tpu.memory_space<vmem>>, vector<32x256xf32>
    %cst = arith.constant dense<0.000000e+00> : vector<8x256xf32>
    %2 = tpu.matmul %0, %1, %cst {dimension_numbers = #tpu.dot_dimension_numbers<[1], [0], [0], [1], [0, 0, 1, 1], [], []>} : vector<8x32xf32>, vector<32x256xf32>, vector<8x256xf32> -> vector<8x256xf32>
    %c0_3 = arith.constant 0 : index
    %c0_4 = arith.constant 0 : index
    %3 = vector.load %arg1[%c0_3, %c0_4] : memref<32x8xf32, #tpu.memory_space<vmem>>, vector<32x8xf32>
    %cst_5 = arith.constant dense<0.000000e+00> : vector<32x256xf32>
    %4 = tpu.matmul %3, %2, %cst_5 {dimension_numbers = #tpu.dot_dimension_numbers<[1], [0], [0], [1], [0, 0, 1, 1], [], []>} : vector<32x8xf32>, vector<8x256xf32>, vector<32x256xf32> -> vector<32x256xf32>
    %cst_6 = arith.constant 0.000000e+00 : f32
    %5 = vector.broadcast %cst_6 : f32 to vector<32x256xf32>
    %6 = arith.cmpf ogt, %4, %5 : vector<32x256xf32>
    %7 = arith.extui %6 : vector<32x256xi1> to vector<32x256xi8>
    %c0_7 = arith.constant 0 : index
    %c0_8 = arith.constant 0 : index
    %8 = vector.load %arg4[%c0_7, %c0_8] : memref<32x256xi8, #tpu.memory_space<vmem>>, vector<32x256xi8>
    tpu.vector_store %arg4[%c0_7, %c0_8], %7 {strides = array<i32>} : memref<32x256xi8, #tpu.memory_space<vmem>>, vector<32x256xi8>,
    return
  }
  func.func @transform_0(%arg0: i32) -> (i32, i32) {
    %c0_i32 = arith.constant 0 : i32
    %c0_i32_0 = arith.constant 0 : i32
    %c0_i32_1 = arith.constant 0 : i32
    return %c0_i32, %c0_i32_0 : i32, i32
  }
  func.func @transform_1(%arg0: i32) -> (i32, i32) {
    %c0_i32 = arith.constant 0 : i32
    %c0_i32_0 = arith.constant 0 : i32
    %c0_i32_1 = arith.constant 0 : i32
    return %c0_i32, %c0_i32_0 : i32, i32
  }
  func.func @transform_2(%arg0: i32) -> (i32, i32) {
    %c0_i32 = arith.constant 0 : i32
    %c0_i32_0 = arith.constant 0 : i32
    return %c0_i32, %arg0 : i32, i32
  }
  func.func @transform_3(%arg0: i32) -> (i32, i32) {
    %c0_i32 = arith.constant 0 : i32
    %c0_i32_0 = arith.constant 0 : i32
    return %c0_i32, %arg0 : i32, i32
  }
}

</mosaic_0001>

<llo_original>
// kernel: instance_segmenter_forward.1
$region0: #{instance_segmenter_forward.1}
  #allocation0 [shape = 'u32[]', space=smem, size = 0x4, offset = 0x4, fixed_abs, tag = 'smem constant byte address 0x4 - core index']
  #allocation1 [shape = 'u32[144,128]{1,0:T(1,128)}', space=vmem, size = 0x12000, scoped, tag = 'internal scratch']
  %s0 = inlined_call_operand.vmem [shape: f32[32,8], index: 0, kind: input, shape index: {}]
  %s1 = inlined_call_operand.vmem [shape: f32[8,32], index: 1, kind: input, shape index: {}]
  %s2 = inlined_call_operand.vmem [shape: f32[32,256], index: 2, kind: input, shape index: {}]
  %s3 = inlined_call_operand.vmem [shape: s8[32,256], index: 3, kind: output, shape index: {}]
  %s4 = sld [smem:[#allocation0]]
  $region22: #{instance_segmenter_forward.1} parent=0
    _
  %s6 = ssub.s32 1, %s4
  %s7 = scalar_select 0, %s6, %s4
  // Predicated region
  $region2: #{instance_segmenter_forward.1} parent=0 // pred_check
    _
  $region3: #{instance_segmenter_forward.1} parent=0 // pred_check_branch
    %9 = sbr.rel (0) target = $region5
  $region4: #{instance_segmenter_forward.1} parent=0 // pred_region
    _
  $region5: #{instance_segmenter_forward.1} parent=0 // pred_fallthru
    _
  // Predicated region
  $region6: #{instance_segmenter_forward.1} parent=0 // pred_check
    _
  $region7: #{instance_segmenter_forward.1} parent=0 // pred_check_branch
    %11 = sbr.rel (0) target = $region9
  $region8: #{instance_segmenter_forward.1} parent=0 // pred_region
    _
  $region9: #{instance_segmenter_forward.1} parent=0 // pred_fallthru
    _
  // Predicated region
  $region10: #{instance_segmenter_forward.1} parent=0 // pred_check
    _
  $region11: #{instance_segmenter_forward.1} parent=0 // pred_check_branch
    %13 = sbr.rel (0) target = $region13
  $region12: #{instance_segmenter_forward.1} parent=0 // pred_region
    _
  $region13: #{instance_segmenter_forward.1} parent=0 // pred_fallthru
    _
  %v16 = vld [vmem:[%s1] sm:$0xff]
  %v17 = vld [vmem:[%s2] sm:$0xff]
  %v18 = vld [vmem:[%s2 + $0x8] sm:$0xff]
  %v19 = vld [vmem:[%s2 + $0x10] sm:$0xff]
  %v20 = vld [vmem:[%s2 + $0x18] sm:$0xff]
  %v21 = vld [vmem:[%s2 + $0x20] sm:$0xff]
  %v22 = vld [vmem:[%s2 + $0x28] sm:$0xff]
  %v23 = vld [vmem:[%s2 + $0x30] sm:$0xff]
  %v24 = vld [vmem:[%s2 + $0x38] sm:$0xff]
  %vm25 = vcmask 261120
  %v27 = vsel %vm25, %v16, 0
  %29 = vmatprep.subr.mxu0 0.0
  %30 = vmatpush1.msra.mxu0 0.0
  %31 = vmatprep.subr.mxu0 0.0
  %32 = vmatpush1.msra.mxu0 0.0
  %33 = vmatprep.subr.mxu0 0.0
  %34 = vmatpush1.msra.mxu0 0.0
  %35 = vmatprep.subr.mxu0 0.0
  %36 = vmatpush1.msra.mxu0 0.0
  %37 = vmatprep.subr.mxu0 0.0
  %38 = vmatpush1.msra.mxu0 0.0
  %39 = vmatprep.subr.mxu0 0.0
  %40 = vmatpush1.msra.mxu0 0.0
  %41 = vmatprep.subr.mxu0 0.0
  %42 = vmatpush1.msra.mxu0 0.0
  %43 = vmatprep.subr.mxu0 0.0
  %44 = vmatpush1.msra.mxu0 0.0
  %45 = vmatprep.subr.mxu0 0.0
  %46 = vmatpush1.msra.mxu0 0.0
  %47 = vmatprep.subr.mxu0 0.0
  %48 = vmatpush1.msra.mxu0 0.0
  %49 = vmatprep.subr.mxu0 0.0
  %50 = vmatpush1.msra.mxu0 0.0
  %51 = vmatprep.subr.mxu0 0.0
  %52 = vmatpush1.msra.mxu0 0.0
  %53 = vmatprep.subr.mxu0 %v24
  %54 = vmatpush1.msra.mxu0 %v23
  %55 = vmatprep.subr.mxu0 %v22
  %56 = vmatpush1.msra.mxu0 %v21
  %57 = vmatprep.subr.mxu0 %v20
  %58 = vmatpush1.msra.mxu0 %v19
  %59 = vmatprep.subr.mxu0 %v18
  %60 = vmatpush1.msra.mxu0 %v17
  %61 = vmatprep.subr.mxu0 0.0
  %62 = vmatpush2.msra.mxu0 0.0
  %63 = vmatprep.subr.mxu0 0.0
  %64 = vmatpush2.msra.mxu0 0.0
  %65 = vmatprep.subr.mxu0 0.0
  %66 = vmatpush2.msra.mxu0 0.0
  %67 = vmatprep.subr.mxu0 0.0
  %68 = vmatpush2.msra.mxu0 0.0
  %69 = vmatprep.subr.mxu0 0.0
  %70 = vmatpush2.msra.mxu0 0.0
  %71 = vmatprep.subr.mxu0 0.0
  %72 = vmatpush2.msra.mxu0 0.0
  %73 = vmatprep.subr.mxu0 0.0
  %74 = vmatpush2.msra.mxu0 0.0
  %75 = vmatprep.subr.mxu0 0.0
  %76 = vmatpush2.msra.mxu0 0.0
  %77 = vmatprep.subr.mxu0 0.0
  %78 = vmatpush2.msra.mxu0 0.0
  %79 = vmatprep.subr.mxu0 0.0
  %80 = vmatpush2.msra.mxu0 0.0
  %81 = vmatprep.subr.mxu0 0.0
  %82 = vmatpush2.msra.mxu0 0.0
  %83 = vmatprep.subr.mxu0 0.0
  %84 = vmatpush2.msra.mxu0 0.0
  %85 = vmatprep.subr.mxu0 0.0
  %86 = vmatpush2.msra.mxu0 0.0
  %87 = vmatprep.subr.mxu0 0.0
  %88 = vmatpush2.msra.mxu0 0.0
  %89 = vmatprep.subr.mxu0 0.0
  %90 = vmatpush2.msra.mxu0 0.0
  %91 = vmatprep.subr.mxu0 0.0
  %92 = vmatpush2.msra.mxu0 0.0
  %93 = vmatprep.mubr.f32.mxu0 0.0
  %94 = vmatmul.mubr.f32.gmra.mxu0 %v27
  %v95 = vpop.f32.mrf.mxu0
  %v96 = vadd.f32 0.0, %v95
  %v97 = vpop.f32.mrf.mxu0
  %v98 = vadd.f32 0.0, %v97
  %99 = vdwg.mxu0
  %v100 = vld [vmem:[%s0] sm:$0xff]
  %v101 = vld [vmem:[%s0 + $0x8] sm:$0xff]
  %v102 = vld [vmem:[%s0 + $0x10] sm:$0xff]
  %v103 = vld [vmem:[%s0 + $0x18] sm:$0xff]
  %vm104 = vcmask 64512
  %v106 = vsel %vm104, %v100, 0
  %v109 = vsel %vm104, %v101, 0
  %v112 = vsel %vm104, %v102, 0
  %v115 = vsel %vm104, %v103, 0
  %117 = vmatprep.subr.mxu0 0.0
  %118 = vmatpush1.msra.mxu0 0.0
  %119 = vmatprep.subr.mxu0 0.0
  %120 = vmatpush1.msra.mxu0 0.0
  %121 = vmatprep.subr.mxu0 0.0
  %122 = vmatpush1.msra.mxu0 0.0
  %123 = vmatprep.subr.mxu0 0.0
  %124 = vmatpush1.msra.mxu0 0.0
  %125 = vmatprep.subr.mxu0 0.0
  %126 = vmatpush1.msra.mxu0 0.0
  %127 = vmatprep.subr.mxu0 0.0
  %128 = vmatpush1.msra.mxu0 0.0
  %129 = vmatprep.subr.mxu0 0.0
  %130 = vmatpush1.msra.mxu0 0.0
  %131 = vmatprep.subr.mxu0 0.0
  %132 = vmatpush1.msra.mxu0 0.0
  %133 = vmatprep.subr.mxu0 0.0
  %134 = vmatpush1.msra.mxu0 0.0
  %135 = vmatprep.subr.mxu0 0.0
  %136 = vmatpush1.msra.mxu0 0.0
  %137 = vmatprep.subr.mxu0 0.0
  %138 = vmatpush1.msra.mxu0 0.0
  %139 = vmatprep.subr.mxu0 0.0
  %140 = vmatpush1.msra.mxu0 0.0
  %141 = vmatprep.subr.mxu0 0.0
  %142 = vmatpush1.msra.mxu0 0.0
  %143 = vmatprep.subr.mxu0 0.0
  %144 = vmatpush1.msra.mxu0 0.0
  %145 = vmatprep.subr.mxu0 0.0
  %146 = vmatpush1.msra.mxu0 0.0
  %147 = vmatprep.subr.mxu0 %v98
  %148 = vmatpush1.msra.mxu0 %v96
  %149 = vmatprep.subr.mxu0 0.0
  %150 = vmatpush2.msra.mxu0 0.0
  %151 = vmatprep.subr.mxu0 0.0
  %152 = vmatpush2.msra.mxu0 0.0
  %153 = vmatprep.subr.mxu0 0.0
  %154 = vmatpush2.msra.mxu0 0.0
  %155 = vmatprep.subr.mxu0 0.0
  %156 = vmatpush2.msra.mxu0 0.0
  %157 = vmatprep.subr.mxu0 0.0
  %158 = vmatpush2.msra.mxu0 0.0
  %159 = vmatprep.subr.mxu0 0.0
  %160 = vmatpush2.msra.mxu0 0.0
  %161 = vmatprep.subr.mxu0 0.0
  %162 = vmatpush2.msra.mxu0 0.0
  %163 = vmatprep.subr.mxu0 0.0
  %164 = vmatpush2.msra.mxu0 0.0
  %165 = vmatprep.subr.mxu0 0.0
  %166 = vmatpush2.msra.mxu0 0.0
  %167 = vmatprep.subr.mxu0 0.0
  %168 = vmatpush2.msra.mxu0 0.0
  %169 = vmatprep.subr.mxu0 0.0
  %170 = vmatpush2.msra.mxu0 0.0
  %171 = vmatprep.subr.mxu0 0.0
  %172 = vmatpush2.msra.mxu0 0.0
  %173 = vmatprep.subr.mxu0 0.0
  %174 = vmatpush2.msra.mxu0 0.0
  %175 = vmatprep.subr.mxu0 0.0
  %176 = vmatpush2.msra.mxu0 0.0
  %177 = vmatprep.subr.mxu0 0.0
  %178 = vmatpush2.msra.mxu0 0.0
  %179 = vmatprep.subr.mxu0 0.0
  %180 = vmatpush2.msra.mxu0 0.0
  %181 = vmatprep.mubr.f32.mxu0 0.0
  %182 = vmatmul.mubr.f32.gmra.mxu0 %v106
  %v183 = vpop.f32.mrf.mxu0
  %v184 = vadd.f32 0.0, %v183
  %v185 = vpop.f32.mrf.mxu0
  %v186 = vadd.f32 0.0, %v185
  %187 = vmatprep.mubr.f32.mxu0 0.0
  %188 = vmatmul.mubr.f32.gmra.mxu0 %v109
  %v189 = vpop.f32.mrf.mxu0
  %v190 = vadd.f32 0.0, %v189
  %v191 = vpop.f32.mrf.mxu0
  %v192 = vadd.f32 0.0, %v191
  %193 = vmatprep.mubr.f32.mxu0 0.0
  %194 = vmatmul.mubr.f32.gmra.mxu0 %v112
  %v195 = vpop.f32.mrf.mxu0
  %v196 = vadd.f32 0.0, %v195
  %v197 = vpop.f32.mrf.mxu0
  %v198 = vadd.f32 0.0, %v197
  %199 = vmatprep.mubr.f32.mxu0 0.0
  %200 = vmatmul.mubr.f32.gmra.mxu0 %v115
  %v201 = vpop.f32.mrf.mxu0
  %v202 = vadd.f32 0.0, %v201
  %v203 = vpop.f32.mrf.mxu0
  %v204 = vadd.f32 0.0, %v203
  %205 = vdwg.mxu0
  %vm206 = vcmp.gt.f32.partialorder %v184, 0.0
  %vm207 = vcmp.gt.f32.partialorder %v186, 0.0
  %vm208 = vcmp.gt.f32.partialorder %v190, 0.0
  %vm209 = vcmp.gt.f32.partialorder %v192, 0.0
  %vm210 = vcmp.gt.f32.partialorder %v196, 0.0
  %vm211 = vcmp.gt.f32.partialorder %v198, 0.0
  %vm212 = vcmp.gt.f32.partialorder %v202, 0.0
  %vm213 = vcmp.gt.f32.partialorder %v204, 0.0
  %vm214 = vmpackc.low %vm208, %vm206
  %vm215 = vmpackc.low %vm212, %vm210
  %vm216 = vmpackc.even %vm215, %vm214
  %vm217 = vmpackc.low %vm209, %vm207
  %vm218 = vmpackc.low %vm213, %vm211
  %vm219 = vmpackc.even %vm218, %vm217
  %v220 = vsel %vm216, 16843009, 0
  %v221 = vsel %vm219, 16843009, 0
  %v222 = vunpack.c.0.s8 %v220
  %v223 = vunpack.c.0.s8 %v221
  %v224 = vunpack.c.1.s8 %v220
  %v225 = vunpack.c.1.s8 %v221
  %v226 = vunpack.c.2.s8 %v220
  %v227 = vunpack.c.2.s8 %v221
  %v228 = vunpack.c.3.s8 %v220
  %v229 = vunpack.c.3.s8 %v221
  %v230 = vpack.c.b16 %v223, %v222
  %v231 = vpack.c.b8 %v230, %v230
  %v232 = vpack.c.b16 %v225, %v224
  %v233 = vpack.c.b8 %v232, %v232
  %v234 = vpack.c.b16 %v227, %v226
  %v235 = vpack.c.b8 %v234, %v234
  %v236 = vpack.c.b16 %v229, %v228
  %v237 = vpack.c.b8 %v236, %v236
  %238 = vst [vmem:[%s3] sm:$0xf] %v231
  %239 = vst [vmem:[%s3 + $0x4] sm:$0xf] %v233
  %240 = vst [vmem:[%s3 + $0x8] sm:$0xf] %v235
  %241 = vst [vmem:[%s3 + $0xc] sm:$0xf] %v237
  // Predicated region
  $region14: #{instance_segmenter_forward.1} parent=0 // pred_check
    _
  $region15: #{instance_segmenter_forward.1} parent=0 // pred_check_branch
    %243 = sbr.rel (0) target = $region17
  $region16: #{instance_segmenter_forward.1} parent=0 // pred_region
    _
  $region17: #{instance_segmenter_forward.1} parent=0 // pred_fallthru
    _
  // Predicated region
  $region18: #{instance_segmenter_forward.1} parent=0 // pred_check
    _
  $region19: #{instance_segmenter_forward.1} parent=0 // pred_check_branch
    %245 = sbr.rel (0) target = $region21
  $region20: #{instance_segmenter_forward.1} parent=0 // pred_region
    _
  $region21: #{instance_segmenter_forward.1} parent=0 // pred_fallthru
    _

</llo_original>
